<compile_context>
chip_gen: v7x
topology: tpu7x:2x2x1
jax: 0.10.0
libtpu: 0.0.40
codegen_flags: <defaults>
</compile_context>

<pallas_src>
import jax
import jax.numpy as jnp
from jax.experimental import pallas as pl
from jax.experimental.pallas import tpu as pltpu


def contrastive_loss(anchor, pos, neg, margin=1.0, block_rows=None):
    """Pallas implementation of ContrastiveLoss.forward (returns a scalar)."""
    assert anchor.shape == pos.shape == neg.shape
    assert anchor.ndim == 2
    B, D = anchor.shape
    itemsize = jnp.dtype(anchor.dtype).itemsize

    # ---- per-generation tile sizing (v5e/v6e: 128 MiB VMEM, v7x: 64 MiB) ----
    try:
        vmem_cap = int(pltpu.get_tpu_info().vmem_capacity_bytes)
    except Exception:  # pragma: no cover - conservative fallback (v7x per-TC)
        vmem_cap = 64 * 1024 * 1024

    if block_rows is None:
        budget = vmem_cap // 4                      # leave plenty of headroom
        tb = budget // (3 * 2 * D * itemsize)       # 3 inputs x 2 pipeline buffers
        tb = max(8, min(int(tb), 2048))
        tb = (tb // 8) * 8                          # sublane-aligned tile
    else:
        tb = int(block_rows)
    tb = max(1, tb)
    if B <= tb:
        tb = B                                      # full-extent block is always legal
    num_tiles = pl.cdiv(B, tb)

    # Explicit scoped-VMEM limit: live double-buffered working set + slack.
    working = 3 * 2 * tb * D * itemsize
    vmem_limit = int(min(max(working + (4 << 20), 32 << 20), int(vmem_cap * 0.9)))

    # Plain Python float -> baked into the kernel as a literal (nothing captured).
    margin_f = float(margin)

    def kernel(a_ref, p_ref, n_ref, out_ref):
        a = a_ref[...].astype(jnp.float32)
        p = p_ref[...].astype(jnp.float32)
        n = n_ref[...].astype(jnp.float32)

        # ||a-p||^2 - ||a-n||^2 == sum((p - n) * (p + n - 2a), dim=1)
        # -> single VPU multiply + single XLU reduction per tile.
        d = jnp.sum((p - n) * (p + n - 2.0 * a), axis=1, keepdims=True)   # (tb, 1)
        hinge = jnp.maximum(d + margin_f, 0.0)

        # Mask rows of a remainder tile that lie beyond the true batch size
        # (padded rows would otherwise each add `margin` to the sum).
        row = pl.program_id(0) * tb + jax.lax.broadcasted_iota(
            jnp.int32, hinge.shape, 0)
        hinge = jnp.where(row < B, hinge, 0.0)

        out_ref[0, 0] = jnp.sum(hinge)

    partials = pl.pallas_call(
        kernel,
        out_shape=jax.ShapeDtypeStruct((num_tiles, 1), jnp.float32),
        grid_spec=pltpu.PrefetchScalarGridSpec(
            num_scalar_prefetch=0,
            grid=(num_tiles,),
            in_specs=[
                pl.BlockSpec((tb, D), lambda i: (i, 0)),
                pl.BlockSpec((tb, D), lambda i: (i, 0)),
                pl.BlockSpec((tb, D), lambda i: (i, 0)),
            ],
            out_specs=pl.BlockSpec((1, 1), lambda i: (i, 0),
                                   memory_space=pltpu.MemorySpace.SMEM),
        ),
        compiler_params=pltpu.CompilerParams(
            dimension_semantics=("parallel",),
            vmem_limit_bytes=vmem_limit,
        ),
    )(anchor, pos, neg)

    # Final reduction and mean in the wrapper (multiply by 1/B, no divide in
    # the kernel epilogue).
    return jnp.sum(partials) * (1.0 / B)


def _reference(anchor, pos, neg, margin=1.0):
    part1 = jnp.sum((anchor - pos) ** 2, axis=1)
    part2 = jnp.sum((anchor - neg) ** 2, axis=1)
    return jnp.mean(jnp.maximum(part1 - part2 + margin, 0.0))


if __name__ == "__main__":
    key = jax.random.PRNGKey(0)
    k1, k2, k3 = jax.random.split(key, 3)

    # Small shapes consistent with the module's forward: (batch, feature_dim).
    B, D = 8, 32
    anchor = jax.random.normal(k1, (B, D), dtype=jnp.float32)
    pos = jax.random.normal(k2, (B, D), dtype=jnp.float32)
    neg = jax.random.normal(k3, (B, D), dtype=jnp.float32)

    loss = contrastive_loss(anchor, pos, neg, margin=1.0)
    jax.block_until_ready(loss)
    ref = _reference(anchor, pos, neg, margin=1.0)
    assert jnp.allclose(loss, ref, rtol=1e-5, atol=1e-4), (loss, ref)

    # Second check: exercise the tiled grid + remainder-row masking path.
    B2 = 20
    k4, k5, k6 = jax.random.split(jax.random.PRNGKey(1), 3)
    a2 = jax.random.normal(k4, (B2, D), dtype=jnp.float32)
    p2 = jax.random.normal(k5, (B2, D), dtype=jnp.float32)
    n2 = jax.random.normal(k6, (B2, D), dtype=jnp.float32)
    loss2 = contrastive_loss(a2, p2, n2, margin=1.0, block_rows=8)  # grid=3, last tile masked
    jax.block_until_ready(loss2)
    ref2 = _reference(a2, p2, n2, margin=1.0)
    assert jnp.allclose(loss2, ref2, rtol=1e-5, atol=1e-4), (loss2, ref2)

    print("KERNEL_OK")
</pallas_src>

<mosaic_0001>
module attributes {stable_mosaic.version = 11 : i64} {
  func.func @kernel(%arg0: i32, %arg1: memref<8x32xf32, #tpu.memory_space<vmem>>, %arg2: memref<8x32xf32, #tpu.memory_space<vmem>>, %arg3: memref<8x32xf32, #tpu.memory_space<vmem>>, %arg4: memref<1x1xf32, #tpu.memory_space<smem>>) attributes {dimension_semantics = [#tpu.dimension_semantics<parallel>], iteration_bounds = array<i64: 1>, scalar_prefetch = 0 : i64, scratch_operands = 0 : i64, tpu.core_type = #tpu.core_type<tc>, window_params = [{transform_indices = @transform_0, window_bounds = array<i64: 8, 32>}, {transform_indices = @transform_1, window_bounds = array<i64: 8, 32>}, {transform_indices = @transform_2, window_bounds = array<i64: 8, 32>}, {transform_indices = @transform_3, window_bounds = array<i64: 1, 1>}]} {
    %c0 = arith.constant 0 : index
    %c0_0 = arith.constant 0 : index
    %0 = vector.load %arg1[%c0, %c0_0] : memref<8x32xf32, #tpu.memory_space<vmem>>, vector<8x32xf32>
    %c0_1 = arith.constant 0 : index
    %c0_2 = arith.constant 0 : index
    %1 = vector.load %arg2[%c0_1, %c0_2] : memref<8x32xf32, #tpu.memory_space<vmem>>, vector<8x32xf32>
    %c0_3 = arith.constant 0 : index
    %c0_4 = arith.constant 0 : index
    %2 = vector.load %arg3[%c0_3, %c0_4] : memref<8x32xf32, #tpu.memory_space<vmem>>, vector<8x32xf32>
    %3 = arith.subf %1, %2 : vector<8x32xf32>
    %4 = arith.addf %1, %2 : vector<8x32xf32>
    %cst = arith.constant 2.000000e+00 : f32
    %5 = vector.broadcast %cst : f32 to vector<8x32xf32>
    %6 = arith.mulf %5, %0 : vector<8x32xf32>
    %7 = arith.subf %4, %6 : vector<8x32xf32>
    %8 = arith.mulf %3, %7 : vector<8x32xf32>
    %cst_5 = arith.constant dense<0.000000e+00> : vector<8xf32>
    %9 = vector.multi_reduction <add>, %8, %cst_5 [1] : vector<8x32xf32> to vector<8xf32>
    %10 = vector.shape_cast %9 : vector<8xf32> to vector<8x1xf32>
    %cst_6 = arith.constant 1.000000e+00 : f32
    %11 = vector.broadcast %cst_6 : f32 to vector<8x1xf32>
    %12 = arith.addf %10, %11 : vector<8x1xf32>
    %cst_7 = arith.constant 0.000000e+00 : f32
    %13 = vector.broadcast %cst_7 : f32 to vector<8x1xf32>
    %14 = arith.maximumf %12, %13 : vector<8x1xf32>
    %c8_i32 = arith.constant 8 : i32
    %15 = arith.muli %arg0, %c8_i32 : i32
    %16 = tpu.iota {dimensions = array<i32: 0>} : vector<8x1xi32>
    %17 = vector.broadcast %15 : i32 to vector<8x1xi32>
    %18 = arith.addi %17, %16 : vector<8x1xi32>
    %c8_i32_8 = arith.constant 8 : i32
    %19 = vector.broadcast %c8_i32_8 : i32 to vector<8x1xi32>
    %20 = arith.cmpi slt, %18, %19 : vector<8x1xi32>
    %cst_9 = arith.constant 0.000000e+00 : f32
    %21 = vector.broadcast %cst_9 : f32 to vector<8x1xf32>
    %22 = arith.select %20, %14, %21 : vector<8x1xi1>, vector<8x1xf32>
    %23 = vector.shape_cast %22 : vector<8x1xf32> to vector<1x8x1xf32>
    %cst_10 = arith.constant dense<0.000000e+00> : vector<1xf32>
    %24 = vector.multi_reduction <add>, %23, %cst_10 [1, 2] : vector<1x8x1xf32> to vector<1xf32>
    %25 = vector.shape_cast %24 : vector<1xf32> to vector<1x1x1xf32>
    %26 = vector.extract %25[0, 0, 0] : f32 from vector<1x1x1xf32>
    %c0_11 = arith.constant 0 : index
    %c0_12 = arith.constant 0 : index
    %27 = memref.load %arg4[%c0_11, %c0_12] : memref<1x1xf32, #tpu.memory_space<smem>>
    memref.store %26, %arg4[%c0_11, %c0_12] : memref<1x1xf32, #tpu.memory_space<smem>>
    return
  }
  func.func @transform_0(%arg0: i32) -> (i32, i32) {
    %c0_i32 = arith.constant 0 : i32
    %c0_i32_0 = arith.constant 0 : i32
    return %arg0, %c0_i32 : i32, i32
  }
  func.func @transform_1(%arg0: i32) -> (i32, i32) {
    %c0_i32 = arith.constant 0 : i32
    %c0_i32_0 = arith.constant 0 : i32
    return %arg0, %c0_i32 : i32, i32
  }
  func.func @transform_2(%arg0: i32) -> (i32, i32) {
    %c0_i32 = arith.constant 0 : i32
    %c0_i32_0 = arith.constant 0 : i32
    return %arg0, %c0_i32 : i32, i32
  }
  func.func @transform_3(%arg0: i32) -> (i32, i32) {
    %c0_i32 = arith.constant 0 : i32
    %c0_i32_0 = arith.constant 0 : i32
    return %arg0, %c0_i32 : i32, i32
  }
}

</mosaic_0001>

<llo_original>
// kernel: tpu_custom_call.1
$region0: #{tpu_custom_call.1}
  #allocation0 [shape = 'u32[]', space=smem, size = 0x4, offset = 0x4, fixed_abs, tag = 'smem constant byte address 0x4 - core index']
  #allocation1 [shape = 'u32[144,128]{1,0:T(1,128)}', space=vmem, size = 0x12000, scoped, tag = 'internal scratch']
  %s0 = inlined_call_operand.hbm [shape: f32[8,32], index: 0, kind: input, shape index: {}]
  %s1 = inlined_call_operand.hbm [shape: f32[8,32], index: 1, kind: input, shape index: {}]
  %s2 = inlined_call_operand.hbm [shape: f32[8,32], index: 2, kind: input, shape index: {}]
  %s3 = inlined_call_operand.hbm [shape: f32[1,1], index: 3, kind: output, shape index: {}]
  %s4 = sld [smem:[#allocation0]]
  $region34: #{tpu_custom_call.1} parent=0
    _
  %s6 = ssub.s32 1, %s4
  %s7 = scalar_select 0, %s6, %s4
  $region1: #{tpu_custom_call.1} parent=0
    #allocation2 [shape = 'u8[4096]{0}', space=vmem, size = 0x1000, scoped, tag = 'input window, operand 0, single buffered']
    #allocation3 [shape = 's32[1]{0}', space=sflag, size = 0x4, scoped, tag = 'scoped memory for tpu_custom_call.1']
    #allocation4 [shape = 's32[1]{0}', space=sflag, size = 0x4, scoped, tag = 'scoped memory for tpu_custom_call.1']
    #allocation5 [shape = 'u8[4096]{0}', space=vmem, size = 0x1000, scoped, tag = 'input window, operand 1, single buffered']
    #allocation6 [shape = 's32[1]{0}', space=sflag, size = 0x4, scoped, tag = 'scoped memory for tpu_custom_call.1']
    #allocation7 [shape = 'u8[4096]{0}', space=vmem, size = 0x1000, scoped, tag = 'input window, operand 2, single buffered']
    #allocation8 [shape = 'u8[512]{0}', space=smem, size = 0x200, scoped, tag = 'output window, operand 0, single buffered']
    %8 = vsyncpa [#allocation3], 0
    %9 = vsyncpa [#allocation6], 0
    %10 = vsyncpa [#allocation4], 0
    // Predicated region
    $region2: #{tpu_custom_call.1} parent=1 // pred_check
      _
    $region3: #{tpu_custom_call.1} parent=1 // pred_check_branch
      %12 = sbr.rel (0) target = $region5
    $region4: #{tpu_custom_call.1} parent=1 // pred_region
      %s14 = ssub.s32 128, 128
      %15 = vsyncadd [#allocation3], %s14
      %s17 = sshll.u32 [#allocation2], 4
      %s18 = int_to_ptr.vmem [resolvable:$true] %s17
      %20 = dma.hbm_to_vmem [thread:$0]  %s0, 128, %s18, [#allocation3]
    $region5: #{tpu_custom_call.1} parent=1 // pred_fallthru
      _
    // Predicated region
    $region6: #{tpu_custom_call.1} parent=1 // pred_check
      _
    $region7: #{tpu_custom_call.1} parent=1 // pred_check_branch
      %22 = sbr.rel (0) target = $region9
    $region8: #{tpu_custom_call.1} parent=1 // pred_region
      %s24 = ssub.s32 128, 128
      %25 = vsyncadd [#allocation6], %s24
      %s27 = sshll.u32 [#allocation5], 4
      %s28 = int_to_ptr.vmem [resolvable:$true] %s27
      %30 = dma.hbm_to_vmem [thread:$0]  %s1, 128, %s28, [#allocation6]
    $region9: #{tpu_custom_call.1} parent=1 // pred_fallthru
      _
    // Predicated region
    $region10: #{tpu_custom_call.1} parent=1 // pred_check
      _
    $region11: #{tpu_custom_call.1} parent=1 // pred_check_branch
      %32 = sbr.rel (0) target = $region13
    $region12: #{tpu_custom_call.1} parent=1 // pred_region
      %s34 = ssub.s32 128, 128
      %35 = vsyncadd [#allocation6], %s34
      %s37 = sshll.u32 [#allocation7], 4
      %s38 = int_to_ptr.vmem [resolvable:$true] %s37
      %40 = dma.hbm_to_vmem [thread:$0]  %s2, 128, %s38, [#allocation6]
    $region13: #{tpu_custom_call.1} parent=1 // pred_fallthru
      _
    // Predicated region
    $region14: #{tpu_custom_call.1} parent=1 // pred_check
      _
    $region15: #{tpu_custom_call.1} parent=1 // pred_check_branch
      %42 = sbr.rel (0) target = $region17
    $region16: #{tpu_custom_call.1} parent=1 // pred_region
      %43 = dma.done [#allocation3], 128
    $region17: #{tpu_custom_call.1} parent=1 // pred_fallthru
      _
    // Predicated region
    $region18: #{tpu_custom_call.1} parent=1 // pred_check
      _
    $region19: #{tpu_custom_call.1} parent=1 // pred_check_branch
      %45 = sbr.rel (0) target = $region21
    $region20: #{tpu_custom_call.1} parent=1 // pred_region
      %46 = dma.done [#allocation6], 128
    $region21: #{tpu_custom_call.1} parent=1 // pred_fallthru
      _
    // Predicated region
    $region22: #{tpu_custom_call.1} parent=1 // pred_check
      _
    $region23: #{tpu_custom_call.1} parent=1 // pred_check_branch
      %48 = sbr.rel (0) target = $region25
    $region24: #{tpu_custom_call.1} parent=1 // pred_region
      %49 = dma.done [#allocation6], 128
    $region25: #{tpu_custom_call.1} parent=1 // pred_fallthru
      _
    %v50 = vld [vmem:[#allocation2] sm:$0xff]
    %v51 = vld [vmem:[#allocation5] sm:$0xff]
    %v52 = vld [vmem:[#allocation7] sm:$0xff]
    %v53 = vsub.f32 %v51, %v52
    %v54 = vadd.f32 %v51, %v52
    %v55 = vmul.f32 %v50, 2.0
    %v56 = vsub.f32 %v54, %v55
    %v57 = vmul.f32 %v53, %v56
    %vm58 = vcmask 261120
    %v59 = vsel %vm58, %v57, 0.0
    %60 = vadd.xlane.f32.xlu0 %v59
    %v61 = vpop.xlane.xlu0 %60
    %v62 = vadd.f32 %v61, 1.0
    %v63 = vmax.f32 %v62, 0.0
    %s64 = smul.u32 0, 8
    %v65 = vlaneseq
    %v66 = vshrl.u32 %v65, 7
    %v67 = vstv %s64
    %v68 = vadd.s32 %v67, %v66
    %vm69 = vcmp.lt.s32.totalorder %v68, 8
    %v70 = vsel %vm69, %v63, 0.0
    %vm71 = vcmask 7168
    %v72 = vsel %vm71, %v70, 0.0
    %73 = vadd.xlane.f32.xlu0 %v72
    %v74 = vpop.xlane.xlu0 %73
    %v75 = vrot.slane %v74, 4
    %v76 = vadd.f32 %v74, %v75
    %v77 = vrot.slane %v76, 2
    %v78 = vadd.f32 %v76, %v77
    %v79 = vrot.slane %v78, 1
    %v80 = vadd.f32 %v78, %v79
    %s81 = vtos %v80
    %s82 = scalar_lea.smem [#allocation8], 0
    %83 = sst [smem:[%s82]] %s81
    // Predicated region
    $region26: #{tpu_custom_call.1} parent=1 // pred_check
      _
    $region27: #{tpu_custom_call.1} parent=1 // pred_check_branch
      %85 = sbr.rel (0) target = $region29
    $region28: #{tpu_custom_call.1} parent=1 // pred_region
      %s87 = ssub.s32 16, 16
      %88 = vsyncadd [#allocation4], %s87
      %91 = dma.smem_to_hbm [#allocation8], 16, %s3, [#allocation4]
    $region29: #{tpu_custom_call.1} parent=1 // pred_fallthru
      _
    // Predicated region
    $region30: #{tpu_custom_call.1} parent=1 // pred_check
      _
    $region31: #{tpu_custom_call.1} parent=1 // pred_check_branch
      %93 = sbr.rel (0) target = $region33
    $region32: #{tpu_custom_call.1} parent=1 // pred_region
      %94 = dma.done [#allocation4], 16
    $region33: #{tpu_custom_call.1} parent=1 // pred_fallthru
      _
    %95 = sfence
    %96 = vsyncpa [#allocation3], 1
    %97 = vsyncpa [#allocation6], 1
    %98 = vsyncpa [#allocation4], 1

</llo_original>
